<compile_context>
chip_gen: v5e
topology: v5e:2x2
jax: 0.10.0
libtpu: 0.0.40
codegen_flags: <defaults>
</compile_context>

<pallas_src>
import math

import jax
import jax.numpy as jnp
from jax.experimental import pallas as pl
from jax.experimental.pallas import tpu as pltpu


def _round_up(n, m):
    return ((n + m - 1) // m) * m


# --------------------------------------------------------------------------- #
# Kernel: fully fused forward for one batch tile.
# 3 MXU matmuls (compute-dtype operands, f32 accumulation) + VPU epilogues.
# --------------------------------------------------------------------------- #
def toyfc_kernel(x_ref, w1_ref, w2_ref, w3_ref, o_ref):
    # Cast activations to the MXU compute dtype in-kernel (VPU work hidden
    # under the MXU) instead of a separate XLA pass in the wrapper.
    x = x_ref[...].astype(w1_ref.dtype)

    # lin1: h = x @ W1^T   (f32 accumulation)
    h = jnp.dot(x, w1_ref[...], preferred_element_type=jnp.float32)

    # lin2 operand: relu(h) fused into the cast (only h stays live in f32).
    a1 = jnp.maximum(h, 0.0).astype(w2_ref.dtype)
    y = jnp.dot(a1, w2_ref[...], preferred_element_type=jnp.float32)

    # Skip connection from pre-activation h (f32), ReLU, cast for lin3.
    u = jnp.maximum(y + h, 0.0).astype(w3_ref.dtype)
    out = jnp.dot(u, w3_ref[...], preferred_element_type=jnp.float32)

    o_ref[...] = out.astype(o_ref.dtype)


# --------------------------------------------------------------------------- #
# One-time weight preparation (hoisted out of the per-call path).
# Accepts PyTorch nn.Linear (out_features, in_features) layout.
# Zero-padding is exact here: layers are bias-free and ReLU(0) = 0.
# --------------------------------------------------------------------------- #
def prepare_toyfc_weights(w1, w2, w3, compute_dtype=jnp.bfloat16):
    H, D_in = w1.shape
    assert w1.shape == (H, D_in), "w1 must be (hidden, input) PyTorch layout"
    assert w2.shape == (H, H), "w2 must be (hidden, hidden)"
    assert w3.shape == (D_in, H), "w3 must be (input, hidden) PyTorch layout"

    # Lane-dense feature dims: multiples of 128 -> unmasked vst, full MXU lanes.
    Dp = _round_up(max(D_in, 128), 128)
    Hp = _round_up(max(H, 128), 128)

    def pad2(a, rows, cols):
        pr, pc = rows - a.shape[0], cols - a.shape[1]
        if pr or pc:
            a = jnp.pad(a, ((0, pr), (0, pc)))
        return a

    # Transpose to (in, out) for plain x @ w, pad, cast once.
    w1p = pad2(w1.T, Dp, Hp).astype(compute_dtype)
    w2p = pad2(w2.T, Hp, Hp).astype(compute_dtype)
    w3p = pad2(w3.T, Hp, Dp).astype(compute_dtype)
    return {"w1p": w1p, "w2p": w2p, "w3p": w3p,
            "D_in": D_in, "H": H, "Dp": Dp, "Hp": Hp}


def _choose_batch_tile(B, tile_b):
    # Minimal-padding tile on a 16-row granule (bf16 sublane packing).
    n_blocks = max(1, math.ceil(B / tile_b))
    tb = _round_up(math.ceil(B / n_blocks), 16)
    # Promote to a 256-multiple (full 2x256x256 MXU pass on v6e/v7x) only if it
    # does not increase the padded batch.
    tb256 = _round_up(tb, 256)
    if _round_up(B, tb256) == _round_up(B, tb):
        tb = tb256
    # Guarantee >= 2 grid blocks when the batch allows it, so the "parallel"
    # axis can shard across both TensorCores on v7x (one extra ~0.35us step
    # elsewhere; negligible).
    if B >= 32 and _round_up(B, tb) // tb < 2:
        tb = max(16, _round_up(math.ceil(B / 2), 16))
    Bp = _round_up(B, tb)
    return tb, Bp


# --------------------------------------------------------------------------- #
# Forward with pre-prepared weights (the fast, intended path).
# --------------------------------------------------------------------------- #
def toyfc_forward_prepared(x, prep, *, tile_b=512, out_dtype=None,
                           vmem_limit_bytes=48 * 1024 * 1024):
    B, D_in = x.shape
    assert D_in == prep["D_in"], "x feature dim must match prepared weights"
    Dp, Hp = prep["Dp"], prep["Hp"]
    w1p, w2p, w3p = prep["w1p"], prep["w2p"], prep["w3p"]
    out_dtype = x.dtype if out_dtype is None else out_dtype

    tb, Bp = _choose_batch_tile(B, tile_b)

    # Pad activations only if actually misaligned; keep original dtype — the
    # kernel casts on the VPU, so x touches HBM exactly once.
    if Bp != B or Dp != D_in:
        xp = jnp.pad(x, ((0, Bp - B), (0, Dp - D_in)))
    else:
        xp = x

    grid = (Bp // tb,)

    flops = 2 * Bp * (Dp * Hp + Hp * Hp + Hp * Dp)
    bytes_accessed = (
        xp.size * xp.dtype.itemsize
        + w1p.size * w1p.dtype.itemsize
        + w2p.size * w2p.dtype.itemsize
        + w3p.size * w3p.dtype.itemsize
        + Bp * Dp * jnp.dtype(out_dtype).itemsize
    )

    def _call(single_buffer_weights):
        if single_buffer_weights:
            w_mode = {"pipeline_mode": pl.Buffered(1)}  # constant index: no re-DMA
        else:
            w_mode = {}
        return pl.pallas_call(
            toyfc_kernel,
            out_shape=jax.ShapeDtypeStruct((Bp, Dp), out_dtype),
            grid_spec=pltpu.PrefetchScalarGridSpec(
                num_scalar_prefetch=0,
                grid=grid,
                in_specs=[
                    pl.BlockSpec((tb, Dp), lambda i: (i, 0)),            # x tile
                    pl.BlockSpec((Dp, Hp), lambda i: (0, 0), **w_mode),  # W1^T resident
                    pl.BlockSpec((Hp, Hp), lambda i: (0, 0), **w_mode),  # W2^T resident
                    pl.BlockSpec((Hp, Dp), lambda i: (0, 0), **w_mode),  # W3^T resident
                ],
                out_specs=pl.BlockSpec((tb, Dp), lambda i: (i, 0)),
            ),
            compiler_params=pltpu.CompilerParams(
                dimension_semantics=("parallel",),
                vmem_limit_bytes=vmem_limit_bytes,
            ),
            cost_estimate=pl.CostEstimate(
                flops=flops, transcendentals=0, bytes_accessed=bytes_accessed),
        )(xp, w1p, w2p, w3p)

    try:
        out_padded = _call(single_buffer_weights=True)
    except Exception:
        # Fallback: identical semantics, default (double) buffering of weights.
        out_padded = _call(single_buffer_weights=False)

    # Strip padding back to the logical output shape.
    return out_padded[:B, :D_in]


# Convenience one-shot wrapper (prep + forward) for callers that do not cache.
def toyfc_forward(x, w1, w2, w3, *, tile_b=512, compute_dtype=jnp.bfloat16,
                  out_dtype=None, vmem_limit_bytes=48 * 1024 * 1024):
    prep = prepare_toyfc_weights(w1, w2, w3, compute_dtype=compute_dtype)
    return toyfc_forward_prepared(x, prep, tile_b=tile_b, out_dtype=out_dtype,
                                  vmem_limit_bytes=vmem_limit_bytes)


def reference_forward(x, w1, w2, w3):
    # Pure-JAX f32 reference, PyTorch-layout weights.
    h = x @ w1.T
    y = jnp.maximum(h, 0.0)
    y = y @ w2.T
    u = jnp.maximum(y + h, 0.0)
    return u @ w3.T


if __name__ == "__main__":
    # Small shapes consistent with the module: batch=8, input_dim=32, hidden=64.
    B, D_IN, HID = 8, 32, 64

    key = jax.random.PRNGKey(0)
    kx, k1, k2, k3 = jax.random.split(key, 4)

    x = jax.random.normal(kx, (B, D_IN), dtype=jnp.float32)
    # PyTorch nn.Linear weight layout: (out_features, in_features).
    w1 = jax.random.normal(k1, (HID, D_IN), dtype=jnp.float32) * 0.1
    w2 = jax.random.normal(k2, (HID, HID), dtype=jnp.float32) * 0.1
    w3 = jax.random.normal(k3, (D_IN, HID), dtype=jnp.float32) * 0.1

    ref = reference_forward(x, w1, w2, w3)

    # f32 compute path: must match the f32 reference tightly.
    prep_f32 = prepare_toyfc_weights(w1, w2, w3, compute_dtype=jnp.float32)
    out_f32 = jax.block_until_ready(toyfc_forward_prepared(x, prep_f32))
    assert out_f32.shape == (B, D_IN)
    assert jnp.allclose(out_f32, ref, atol=1e-5, rtol=1e-5), "f32 path mismatch"

    # bf16-operand / f32-accumulate fast path (weights prepared once, reused).
    prep_bf16 = prepare_toyfc_weights(w1, w2, w3, compute_dtype=jnp.bfloat16)
    out_bf16 = jax.block_until_ready(toyfc_forward_prepared(x, prep_bf16))
    assert out_bf16.shape == (B, D_IN)
    assert jnp.allclose(out_bf16, ref, atol=2e-2, rtol=2e-2), "bf16 path mismatch"

    print("KERNEL_OK")
</pallas_src>

<mosaic_0001>
module attributes {stable_mosaic.version = 11 : i64} {
  func.func @toyfc_kernel(%arg0: i32, %arg1: memref<16x128xf32, #tpu.memory_space<vmem>>, %arg2: memref<128x128xf32, #tpu.memory_space<vmem>>, %arg3: memref<128x128xf32, #tpu.memory_space<vmem>>, %arg4: memref<128x128xf32, #tpu.memory_space<vmem>>, %arg5: memref<16x128xf32, #tpu.memory_space<vmem>>) attributes {dimension_semantics = [#tpu.dimension_semantics<parallel>], iteration_bounds = array<i64: 1>, scalar_prefetch = 0 : i64, scratch_operands = 0 : i64, tpu.core_type = #tpu.core_type<tc>, window_params = [{transform_indices = @transform_0, window_bounds = array<i64: 16, 128>}, {pipeline_mode = #tpu.pipeline_mode<synchronous>, transform_indices = @transform_1, window_bounds = array<i64: 128, 128>}, {pipeline_mode = #tpu.pipeline_mode<synchronous>, transform_indices = @transform_2, window_bounds = array<i64: 128, 128>}, {pipeline_mode = #tpu.pipeline_mode<synchronous>, transform_indices = @transform_3, window_bounds = array<i64: 128, 128>}, {transform_indices = @transform_4, window_bounds = array<i64: 16, 128>}]} {
    %c0 = arith.constant 0 : index
    %c0_0 = arith.constant 0 : index
    %0 = vector.load %arg1[%c0, %c0_0] : memref<16x128xf32, #tpu.memory_space<vmem>>, vector<16x128xf32>
    %c0_1 = arith.constant 0 : index
    %c0_2 = arith.constant 0 : index
    %1 = vector.load %arg2[%c0_1, %c0_2] : memref<128x128xf32, #tpu.memory_space<vmem>>, vector<128x128xf32>
    %cst = arith.constant dense<0.000000e+00> : vector<16x128xf32>
    %2 = tpu.matmul %0, %1, %cst {dimension_numbers = #tpu.dot_dimension_numbers<[1], [0], [0], [1], [0, 0, 1, 1], [], []>} : vector<16x128xf32>, vector<128x128xf32>, vector<16x128xf32> -> vector<16x128xf32>
    %cst_3 = arith.constant 0.000000e+00 : f32
    %3 = vector.broadcast %cst_3 : f32 to vector<16x128xf32>
    %4 = arith.maximumf %2, %3 : vector<16x128xf32>
    %c0_4 = arith.constant 0 : index
    %c0_5 = arith.constant 0 : index
    %5 = vector.load %arg3[%c0_4, %c0_5] : memref<128x128xf32, #tpu.memory_space<vmem>>, vector<128x128xf32>
    %cst_6 = arith.constant dense<0.000000e+00> : vector<16x128xf32>
    %6 = tpu.matmul %4, %5, %cst_6 {dimension_numbers = #tpu.dot_dimension_numbers<[1], [0], [0], [1], [0, 0, 1, 1], [], []>} : vector<16x128xf32>, vector<128x128xf32>, vector<16x128xf32> -> vector<16x128xf32>
    %7 = arith.addf %6, %2 : vector<16x128xf32>
    %cst_7 = arith.constant 0.000000e+00 : f32
    %8 = vector.broadcast %cst_7 : f32 to vector<16x128xf32>
    %9 = arith.maximumf %7, %8 : vector<16x128xf32>
    %c0_8 = arith.constant 0 : index
    %c0_9 = arith.constant 0 : index
    %10 = vector.load %arg4[%c0_8, %c0_9] : memref<128x128xf32, #tpu.memory_space<vmem>>, vector<128x128xf32>
    %cst_10 = arith.constant dense<0.000000e+00> : vector<16x128xf32>
    %11 = tpu.matmul %9, %10, %cst_10 {dimension_numbers = #tpu.dot_dimension_numbers<[1], [0], [0], [1], [0, 0, 1, 1], [], []>} : vector<16x128xf32>, vector<128x128xf32>, vector<16x128xf32> -> vector<16x128xf32>
    %c0_11 = arith.constant 0 : index
    %c0_12 = arith.constant 0 : index
    %12 = vector.load %arg5[%c0_11, %c0_12] : memref<16x128xf32, #tpu.memory_space<vmem>>, vector<16x128xf32>
    tpu.vector_store %arg5[%c0_11, %c0_12], %11 {strides = array<i32>} : memref<16x128xf32, #tpu.memory_space<vmem>>, vector<16x128xf32>,
    return
  }
  func.func @transform_0(%arg0: i32) -> (i32, i32) {
    %c0_i32 = arith.constant 0 : i32
    %c0_i32_0 = arith.constant 0 : i32
    return %arg0, %c0_i32 : i32, i32
  }
  func.func @transform_1(%arg0: i32) -> (i32, i32) {
    %c0_i32 = arith.constant 0 : i32
    %c0_i32_0 = arith.constant 0 : i32
    %c0_i32_1 = arith.constant 0 : i32
    return %c0_i32, %c0_i32_0 : i32, i32
  }
  func.func @transform_2(%arg0: i32) -> (i32, i32) {
    %c0_i32 = arith.constant 0 : i32
    %c0_i32_0 = arith.constant 0 : i32
    %c0_i32_1 = arith.constant 0 : i32
    return %c0_i32, %c0_i32_0 : i32, i32
  }
  func.func @transform_3(%arg0: i32) -> (i32, i32) {
    %c0_i32 = arith.constant 0 : i32
    %c0_i32_0 = arith.constant 0 : i32
    %c0_i32_1 = arith.constant 0 : i32
    return %c0_i32, %c0_i32_0 : i32, i32
  }
  func.func @transform_4(%arg0: i32) -> (i32, i32) {
    %c0_i32 = arith.constant 0 : i32
    %c0_i32_0 = arith.constant 0 : i32
    return %arg0, %c0_i32 : i32, i32
  }
}

module attributes {stable_mosaic.version = 11 : i64} {
  func.func @toyfc_kernel(%arg0: i32, %arg1: memref<16x128xf32, #tpu.memory_space<vmem>>, %arg2: memref<128x128xf32, #tpu.memory_space<vmem>>, %arg3: memref<128x128xf32, #tpu.memory_space<vmem>>, %arg4: memref<128x128xf32, #tpu.memory_space<vmem>>, %arg5: memref<16x128xf32, #tpu.memory_space<vmem>>) attributes {dimension_semantics = [#tpu.dimension_semantics<parallel>], iteration_bounds = array<i64: 1>, scalar_prefetch = 0 : i64, scratch_operands = 0 : i64, tpu.core_type = #tpu.core_type<tc>, window_params = [{transform_indices = @transform_0, window_bounds = array<i64: 16, 128>}, {pipeline_mode = #tpu.pipeline_mode<synchronous>, transform_indices = @transform_1, window_bounds = array<i64: 128, 128>}, {pipeline_mode = #tpu.pipeline_mode<synchronous>, transform_indices = @transform_2, window_bounds = array<i64: 128, 128>}, {pipeline_mode = #tpu.pipeline_mode<synchronous>, transform_indices = @transform_3, window_bounds = array<i64: 128, 128>}, {transform_indices = @transform_4, window_bounds = array<i64: 16, 128>}]} {
    %c0 = arith.constant 0 : index
    %c0_0 = arith.constant 0 : index
    %0 = vector.load %arg1[%c0, %c0_0] : memref<16x128xf32, #tpu.memory_space<vmem>>, vector<16x128xf32>
    %c0_1 = arith.constant 0 : index
    %c0_2 = arith.constant 0 : index
    %1 = vector.load %arg2[%c0_1, %c0_2] : memref<128x128xf32, #tpu.memory_space<vmem>>, vector<128x128xf32>
    %cst = arith.constant dense<0.000000e+00> : vector<16x128xf32>
    %2 = tpu.matmul %0, %1, %cst {dimension_numbers = #tpu.dot_dimension_numbers<[1], [0], [0], [1], [0, 0, 1, 1], [], []>} : vector<16x128xf32>, vector<128x128xf32>, vector<16x128xf32> -> vector<16x128xf32>
    %cst_3 = arith.constant 0.000000e+00 : f32
    %3 = vector.broadcast %cst_3 : f32 to vector<16x128xf32>
    %4 = arith.maximumf %2, %3 : vector<16x128xf32>
    %c0_4 = arith.constant 0 : index
    %c0_5 = arith.constant 0 : index
    %5 = vector.load %arg3[%c0_4, %c0_5] : memref<128x128xf32, #tpu.memory_space<vmem>>, vector<128x128xf32>
    %cst_6 = arith.constant dense<0.000000e+00> : vector<16x128xf32>
    %6 = tpu.matmul %4, %5, %cst_6 {dimension_numbers = #tpu.dot_dimension_numbers<[1], [0], [0], [1], [0, 0, 1, 1], [], []>} : vector<16x128xf32>, vector<128x128xf32>, vector<16x128xf32> -> vector<16x128xf32>
    %7 = arith.addf %6, %2 : vector<16x128xf32>
    %cst_7 = arith.constant 0.000000e+00 : f32
    %8 = vector.broadcast %cst_7 : f32 to vector<16x128xf32>
    %9 = arith.maximumf %7, %8 : vector<16x128xf32>
    %c0_8 = arith.constant 0 : index
    %c0_9 = arith.constant 0 : index
    %10 = vector.load %arg4[%c0_8, %c0_9] : memref<128x128xf32, #tpu.memory_space<vmem>>, vector<128x128xf32>
    %cst_10 = arith.constant dense<0.000000e+00> : vector<16x128xf32>
    %11 = tpu.matmul %9, %10, %cst_10 {dimension_numbers = #tpu.dot_dimension_numbers<[1], [0], [0], [1], [0, 0, 1, 1], [], []>} : vector<16x128xf32>, vector<128x128xf32>, vector<16x128xf32> -> vector<16x128xf32>
    %c0_11 = arith.constant 0 : index
    %c0_12 = arith.constant 0 : index
    %12 = vector.load %arg5[%c0_11, %c0_12] : memref<16x128xf32, #tpu.memory_space<vmem>>, vector<16x128xf32>
    tpu.vector_store %arg5[%c0_11, %c0_12], %11 {strides = array<i32>} : memref<16x128xf32, #tpu.memory_space<vmem>>, vector<16x128xf32>,
    return
  }
  func.func @transform_0(%arg0: i32) -> (i32, i32) {
    %c0_i32 = arith.constant 0 : i32
    %c0_i32_0 = arith.constant 0 : i32
    return %arg0, %c0_i32 : i32, i32
  }
  func.func @transform_1(%arg0: i32) -> (i32, i32) {
    %c0_i32 = arith.constant 0 : i32
    %c0_i32_0 = arith.constant 0 : i32
    %c0_i32_1 = arith.constant 0 : i32
    return %c0_i32, %c0_i32_0 : i32, i32
  }
  func.func @transform_2(%arg0: i32) -> (i32, i32) {
    %c0_i32 = arith.constant 0 : i32
    %c0_i32_0 = arith.constant 0 : i32
    %c0_i32_1 = arith.constant 0 : i32
    return %c0_i32, %c0_i32_0 : i32, i32
  }
  func.func @transform_3(%arg0: i32) -> (i32, i32) {
    %c0_i32 = arith.constant 0 : i32
    %c0_i32_0 = arith.constant 0 : i32
    %c0_i32_1 = arith.constant 0 : i32
    return %c0_i32, %c0_i32_0 : i32, i32
  }
  func.func @transform_4(%arg0: i32) -> (i32, i32) {
    %c0_i32 = arith.constant 0 : i32
    %c0_i32_0 = arith.constant 0 : i32
    return %arg0, %c0_i32 : i32, i32
  }
}

</mosaic_0001>

<llo_original>
// kernel: tpu_custom_call.1
$region0: #{tpu_custom_call.1}
  #allocation0 [shape = 'u32[]', space=smem, size = 0x4, offset = 0x4, fixed_abs, tag = 'smem constant byte address 0x4 - core index']
  #allocation1 [shape = 'u32[72,128]{1,0:T(1,128)}', space=vmem, size = 0x9000, scoped, tag = 'internal scratch']
  %s0 = inlined_call_operand.hbm [shape: f32[16,128], index: 0, kind: input, shape index: {}]
  %s1 = inlined_call_operand.hbm [shape: f32[128,128], index: 1, kind: input, shape index: {}]
  %s2 = inlined_call_operand.hbm [shape: f32[128,128], index: 2, kind: input, shape index: {}]
  %s3 = inlined_call_operand.hbm [shape: f32[128,128], index: 3, kind: input, shape index: {}]
  %s4 = inlined_call_operand.hbm [shape: f32[16,128], index: 4, kind: output, shape index: {}]
  %s5 = sld [smem:[#allocation0]]
  $region42: #{tpu_custom_call.1} parent=0
    _
  %s7 = ssub.s32 1, %s5
  %s8 = scalar_select 0, %s7, %s5
  $region1: #{tpu_custom_call.1} parent=0
    #allocation2 [shape = 'u8[8192]{0}', space=vmem, size = 0x2000, scoped, tag = 'input window, operand 0, single buffered']
    #allocation3 [shape = 's32[1]{0}', space=sflag, size = 0x4, scoped, tag = 'scoped memory for tpu_custom_call.1']
    #allocation4 [shape = 's32[1]{0}', space=sflag, size = 0x4, scoped, tag = 'scoped memory for tpu_custom_call.1']
    #allocation5 [shape = 'u8[65536]{0}', space=vmem, size = 0x10000, scoped, tag = 'input window, operand 1, single buffered']
    #allocation6 [shape = 's32[1]{0}', space=sflag, size = 0x4, scoped, tag = 'scoped memory for tpu_custom_call.1']
    #allocation7 [shape = 'u8[65536]{0}', space=vmem, size = 0x10000, scoped, tag = 'input window, operand 2, single buffered']
    #allocation8 [shape = 'u8[65536]{0}', space=vmem, size = 0x10000, scoped, tag = 'input window, operand 3, single buffered']
    #allocation9 [shape = 's32[1]{0}', space=sflag, size = 0x4, scoped, tag = 'scoped memory for tpu_custom_call.1']
    #allocation10 [shape = 'u8[8192]{0}', space=vmem, size = 0x2000, scoped, tag = 'output window, operand 0, single buffered']
    %9 = vsyncpa [#allocation3], 0
    %10 = vsyncpa [#allocation6], 0
    %11 = vsyncpa [#allocation9], 0
    %12 = vsyncpa [#allocation4], 0
    // Predicated region
    $region2: #{tpu_custom_call.1} parent=1 // pred_check
      _
    $region3: #{tpu_custom_call.1} parent=1 // pred_check_branch
      %14 = sbr.rel (0) target = $region5
    $region4: #{tpu_custom_call.1} parent=1 // pred_region
      %16 = vsyncadd [#allocation3], 0
      %s17 = sshll.u32 %s0, 4
      %s18 = int_to_ptr.hbm [resolvable:$true] %s17
      %s19 = sshll.u32 [#allocation2], 4
      %s20 = int_to_ptr.vmem [resolvable:$true] %s19
      %25 = dma.hbm_to_vmem [thread:$0]  %s18, 256, %s20, [#allocation3], 128, 128, 8
    $region5: #{tpu_custom_call.1} parent=1 // pred_fallthru
      _
    // Predicated region
    $region6: #{tpu_custom_call.1} parent=1 // pred_check
      _
    $region7: #{tpu_custom_call.1} parent=1 // pred_check_branch
      %27 = sbr.rel (0) target = $region9
    $region8: #{tpu_custom_call.1} parent=1 // pred_region
      %29 = vsyncadd [#allocation6], 0
      %s30 = sshll.u32 %s1, 4
      %s31 = int_to_ptr.hbm [resolvable:$true] %s30
      %s32 = sshll.u32 [#allocation5], 4
      %s33 = int_to_ptr.vmem [resolvable:$true] %s32
      %38 = dma.hbm_to_vmem [thread:$0]  %s31, 2048, %s33, [#allocation6], 128, 128, 8
    $region9: #{tpu_custom_call.1} parent=1 // pred_fallthru
      _
    // Predicated region
    $region10: #{tpu_custom_call.1} parent=1 // pred_check
      _
    $region11: #{tpu_custom_call.1} parent=1 // pred_check_branch
      %40 = sbr.rel (0) target = $region13
    $region12: #{tpu_custom_call.1} parent=1 // pred_region
      %42 = vsyncadd [#allocation6], 0
      %s43 = sshll.u32 %s2, 4
      %s44 = int_to_ptr.hbm [resolvable:$true] %s43
      %s45 = sshll.u32 [#allocation7], 4
      %s46 = int_to_ptr.vmem [resolvable:$true] %s45
      %51 = dma.hbm_to_vmem [thread:$0]  %s44, 2048, %s46, [#allocation6], 128, 128, 8
    $region13: #{tpu_custom_call.1} parent=1 // pred_fallthru
      _
    // Predicated region
    $region14: #{tpu_custom_call.1} parent=1 // pred_check
      _
    $region15: #{tpu_custom_call.1} parent=1 // pred_check_branch
      %53 = sbr.rel (0) target = $region17
    $region16: #{tpu_custom_call.1} parent=1 // pred_region
      %55 = vsyncadd [#allocation9], 0
      %s56 = sshll.u32 %s3, 4
      %s57 = int_to_ptr.hbm [resolvable:$true] %s56
      %s58 = sshll.u32 [#allocation8], 4
      %s59 = int_to_ptr.vmem [resolvable:$true] %s58
      %64 = dma.hbm_to_vmem [thread:$0]  %s57, 2048, %s59, [#allocation9], 128, 128, 8
    $region17: #{tpu_custom_call.1} parent=1 // pred_fallthru
      _
    // Predicated region
    $region18: #{tpu_custom_call.1} parent=1 // pred_check
      _
    $region19: #{tpu_custom_call.1} parent=1 // pred_check_branch
      %66 = sbr.rel (0) target = $region21
    $region20: #{tpu_custom_call.1} parent=1 // pred_region
      %68 = dma.done [#allocation3], 256
    $region21: #{tpu_custom_call.1} parent=1 // pred_fallthru
      _
    // Predicated region
    $region22: #{tpu_custom_call.1} parent=1 // pred_check
      _
    $region23: #{tpu_custom_call.1} parent=1 // pred_check_branch
      %70 = sbr.rel (0) target = $region25
    $region24: #{tpu_custom_call.1} parent=1 // pred_region
      %72 = dma.done [#allocation6], 2048
    $region25: #{tpu_custom_call.1} parent=1 // pred_fallthru
      _
    // Predicated region
    $region26: #{tpu_custom_call.1} parent=1 // pred_check
      _
    $region27: #{tpu_custom_call.1} parent=1 // pred_check_branch
      %74 = sbr.rel (0) target = $region29
    $region28: #{tpu_custom_call.1} parent=1 // pred_region
      %76 = dma.done [#allocation6], 2048
    $region29: #{tpu_custom_call.1} parent=1 // pred_fallthru
      _
    // Predicated region
    $region30: #{tpu_custom_call.1} parent=1 // pred_check
      _
    $region31: #{tpu_custom_call.1} parent=1 // pred_check_branch
      %78 = sbr.rel (0) target = $region33
    $region32: #{tpu_custom_call.1} parent=1 // pred_region
      %80 = dma.done [#allocation9], 2048
    $region33: #{tpu_custom_call.1} parent=1 // pred_fallthru
      _
    %v81 = vld [vmem:[#allocation2] sm:$0xff]
    %v82 = vld [vmem:[#allocation2 + $0x8] sm:$0xff]
    %v83 = vld [vmem:[#allocation5] sm:$0xff]
    %v84 = vld [vmem:[#allocation5 + $0x8] sm:$0xff]
    %v85 = vld [vmem:[#allocation5 + $0x10] sm:$0xff]
    %v86 = vld [vmem:[#allocation5 + $0x18] sm:$0xff]
    %v87 = vld [vmem:[#allocation5 + $0x20] sm:$0xff]
    %v88 = vld [vmem:[#allocation5 + $0x28] sm:$0xff]
    %v89 = vld [vmem:[#allocation5 + $0x30] sm:$0xff]
    %v90 = vld [vmem:[#allocation5 + $0x38] sm:$0xff]
    %v91 = vld [vmem:[#allocation5 + $0x40] sm:$0xff]
    %v92 = vld [vmem:[#allocation5 + $0x48] sm:$0xff]
    %v93 = vld [vmem:[#allocation5 + $0x50] sm:$0xff]
    %v94 = vld [vmem:[#allocation5 + $0x58] sm:$0xff]
    %v95 = vld [vmem:[#allocation5 + $0x60] sm:$0xff]
    %v96 = vld [vmem:[#allocation5 + $0x68] sm:$0xff]
    %v97 = vld [vmem:[#allocation5 + $0x70] sm:$0xff]
    %v98 = vld [vmem:[#allocation5 + $0x78] sm:$0xff]
    %99 = vmatpush.msra.mxu0 %v98
    %100 = vmatpush.msra.mxu0 %v97
    %101 = vmatpush.msra.mxu0 %v96
    %102 = vmatpush.msra.mxu0 %v95
    %103 = vmatpush.msra.mxu0 %v94
    %104 = vmatpush.msra.mxu0 %v93
    %105 = vmatpush.msra.mxu0 %v92
    %106 = vmatpush.msra.mxu0 %v91
    %107 = vmatpush.msra.mxu0 %v90
    %108 = vmatpush.msra.mxu0 %v89
    %109 = vmatpush.msra.mxu0 %v88
    %110 = vmatpush.msra.mxu0 %v87
    %111 = vmatpush.msra.mxu0 %v86
    %112 = vmatpush.msra.mxu0 %v85
    %113 = vmatpush.msra.mxu0 %v84
    %114 = vmatpush.msra.mxu0 %v83
    %115 = vmatmul.f32.gmra.mxu0 %v81
    %v116 = vpop.f32.mrf.mxu0
    %v117 = vadd.f32 0.0, %v116
    %118 = vmatmul.f32.gmra.mxu0 %v82
    %v119 = vpop.f32.mrf.mxu0
    %v120 = vadd.f32 0.0, %v119
    %121 = vdwg.mxu0
    %v122 = vmax.f32 %v117, 0.0
    %v123 = vmax.f32 %v120, 0.0
    %v124 = vld [vmem:[#allocation7] sm:$0xff]
    %v125 = vld [vmem:[#allocation7 + $0x8] sm:$0xff]
    %v126 = vld [vmem:[#allocation7 + $0x10] sm:$0xff]
    %v127 = vld [vmem:[#allocation7 + $0x18] sm:$0xff]
    %v128 = vld [vmem:[#allocation7 + $0x20] sm:$0xff]
    %v129 = vld [vmem:[#allocation7 + $0x28] sm:$0xff]
    %v130 = vld [vmem:[#allocation7 + $0x30] sm:$0xff]
    %v131 = vld [vmem:[#allocation7 + $0x38] sm:$0xff]
    %v132 = vld [vmem:[#allocation7 + $0x40] sm:$0xff]
    %v133 = vld [vmem:[#allocation7 + $0x48] sm:$0xff]
    %v134 = vld [vmem:[#allocation7 + $0x50] sm:$0xff]
    %v135 = vld [vmem:[#allocation7 + $0x58] sm:$0xff]
    %v136 = vld [vmem:[#allocation7 + $0x60] sm:$0xff]
    %v137 = vld [vmem:[#allocation7 + $0x68] sm:$0xff]
    %v138 = vld [vmem:[#allocation7 + $0x70] sm:$0xff]
    %v139 = vld [vmem:[#allocation7 + $0x78] sm:$0xff]
    %140 = vmatpush.msra.mxu0 %v139
    %141 = vmatpush.msra.mxu0 %v138
    %142 = vmatpush.msra.mxu0 %v137
    %143 = vmatpush.msra.mxu0 %v136
    %144 = vmatpush.msra.mxu0 %v135
    %145 = vmatpush.msra.mxu0 %v134
    %146 = vmatpush.msra.mxu0 %v133
    %147 = vmatpush.msra.mxu0 %v132
    %148 = vmatpush.msra.mxu0 %v131
    %149 = vmatpush.msra.mxu0 %v130
    %150 = vmatpush.msra.mxu0 %v129
    %151 = vmatpush.msra.mxu0 %v128
    %152 = vmatpush.msra.mxu0 %v127
    %153 = vmatpush.msra.mxu0 %v126
    %154 = vmatpush.msra.mxu0 %v125
    %155 = vmatpush.msra.mxu0 %v124
    %156 = vmatmul.f32.gmra.mxu0 %v122
    %v157 = vpop.f32.mrf.mxu0
    %v158 = vadd.f32 %v117, %v157
    %159 = vmatmul.f32.gmra.mxu0 %v123
    %v160 = vpop.f32.mrf.mxu0
    %v161 = vadd.f32 %v120, %v160
    %162 = vdwg.mxu0
    %v163 = vmax.f32 %v158, 0.0
    %v164 = vmax.f32 %v161, 0.0
    %v165 = vld [vmem:[#allocation8] sm:$0xff]
    %v166 = vld [vmem:[#allocation8 + $0x8] sm:$0xff]
    %v167 = vld [vmem:[#allocation8 + $0x10] sm:$0xff]
    %v168 = vld [vmem:[#allocation8 + $0x18] sm:$0xff]
    %v169 = vld [vmem:[#allocation8 + $0x20] sm:$0xff]
    %v170 = vld [vmem:[#allocation8 + $0x28] sm:$0xff]
    %v171 = vld [vmem:[#allocation8 + $0x30] sm:$0xff]
    %v172 = vld [vmem:[#allocation8 + $0x38] sm:$0xff]
    %v173 = vld [vmem:[#allocation8 + $0x40] sm:$0xff]
    %v174 = vld [vmem:[#allocation8 + $0x48] sm:$0xff]
    %v175 = vld [vmem:[#allocation8 + $0x50] sm:$0xff]
    %v176 = vld [vmem:[#allocation8 + $0x58] sm:$0xff]
    %v177 = vld [vmem:[#allocation8 + $0x60] sm:$0xff]
    %v178 = vld [vmem:[#allocation8 + $0x68] sm:$0xff]
    %v179 = vld [vmem:[#allocation8 + $0x70] sm:$0xff]
    %v180 = vld [vmem:[#allocation8 + $0x78] sm:$0xff]
    %181 = vmatpush.msra.mxu0 %v180
    %182 = vmatpush.msra.mxu0 %v179
    %183 = vmatpush.msra.mxu0 %v178
    %184 = vmatpush.msra.mxu0 %v177
    %185 = vmatpush.msra.mxu0 %v176
    %186 = vmatpush.msra.mxu0 %v175
    %187 = vmatpush.msra.mxu0 %v174
    %188 = vmatpush.msra.mxu0 %v173
    %189 = vmatpush.msra.mxu0 %v172
    %190 = vmatpush.msra.mxu0 %v171
    %191 = vmatpush.msra.mxu0 %v170
    %192 = vmatpush.msra.mxu0 %v169
    %193 = vmatpush.msra.mxu0 %v168
    %194 = vmatpush.msra.mxu0 %v167
    %195 = vmatpush.msra.mxu0 %v166
    %196 = vmatpush.msra.mxu0 %v165
    %197 = vmatmul.f32.gmra.mxu0 %v163
    %v198 = vpop.f32.mrf.mxu0
    %v199 = vadd.f32 0.0, %v198
    %200 = vmatmul.f32.gmra.mxu0 %v164
    %v201 = vpop.f32.mrf.mxu0
    %v202 = vadd.f32 0.0, %v201
    %203 = vdwg.mxu0
    %204 = vst [vmem:[#allocation10] sm:$0xff] %v199
    %205 = vst [vmem:[#allocation10 + $0x8] sm:$0xff] %v202
    // Predicated region
    $region34: #{tpu_custom_call.1} parent=1 // pred_check
      _
    $region35: #{tpu_custom_call.1} parent=1 // pred_check_branch
      %207 = sbr.rel (0) target = $region37
    $region36: #{tpu_custom_call.1} parent=1 // pred_region
      %209 = vsyncadd [#allocation4], 0
      %s210 = sshll.u32 [#allocation10], 4
      %s211 = int_to_ptr.vmem [resolvable:$true] %s210
      %s212 = sshll.u32 %s4, 4
      %s213 = int_to_ptr.hbm [resolvable:$true] %s212
      %218 = dma.vmem_to_hbm [thread:$0]  %s211, 256, %s213, [#allocation4], 128, 128, 8
    $region37: #{tpu_custom_call.1} parent=1 // pred_fallthru
      _
    // Predicated region
    $region38: #{tpu_custom_call.1} parent=1 // pred_check
      _
    $region39: #{tpu_custom_call.1} parent=1 // pred_check_branch
      %220 = sbr.rel (0) target = $region41
    $region40: #{tpu_custom_call.1} parent=1 // pred_region
      %222 = dma.done [#allocation4], 256
    $region41: #{tpu_custom_call.1} parent=1 // pred_fallthru
      _
    %223 = vsyncpa [#allocation3], 1
    %224 = vsyncpa [#allocation6], 1
    %225 = vsyncpa [#allocation9], 1
    %226 = vsyncpa [#allocation4], 1

// kernel: tpu_custom_call.1
$region0: #{tpu_custom_call.1}
  #allocation0 [shape = 'u32[]', space=smem, size = 0x4, offset = 0x4, fixed_abs, tag = 'smem constant byte address 0x4 - core index']
  #allocation1 [shape = 'u32[72,128]{1,0:T(1,128)}', space=vmem, size = 0x9000, scoped, tag = 'internal scratch']
  %s0 = inlined_call_operand.hbm [shape: f32[16,128], index: 0, kind: input, shape index: {}]
  %s1 = inlined_call_operand.hbm [shape: f32[128,128], index: 1, kind: input, shape index: {}]
  %s2 = inlined_call_operand.hbm [shape: f32[128,128], index: 2, kind: input, shape index: {}]
  %s3 = inlined_call_operand.hbm [shape: f32[128,128], index: 3, kind: input, shape index: {}]
  %s4 = inlined_call_operand.hbm [shape: f32[16,128], index: 4, kind: output, shape index: {}]
  %s5 = sld [smem:[#allocation0]]
  $region42: #{tpu_custom_call.1} parent=0
    _
  %s7 = ssub.s32 1, %s5
  %s8 = scalar_select 0, %s7, %s5
  $region1: #{tpu_custom_call.1} parent=0
    #allocation2 [shape = 'u8[8192]{0}', space=vmem, size = 0x2000, scoped, tag = 'input window, operand 0, single buffered']
    #allocation3 [shape = 's32[1]{0}', space=sflag, size = 0x4, scoped, tag = 'scoped memory for tpu_custom_call.1']
    #allocation4 [shape = 's32[1]{0}', space=sflag, size = 0x4, scoped, tag = 'scoped memory for tpu_custom_call.1']
    #allocation5 [shape = 'u8[65536]{0}', space=vmem, size = 0x10000, scoped, tag = 'input window, operand 1, single buffered']
    #allocation6 [shape = 's32[1]{0}', space=sflag, size = 0x4, scoped, tag = 'scoped memory for tpu_custom_call.1']
    #allocation7 [shape = 'u8[65536]{0}', space=vmem, size = 0x10000, scoped, tag = 'input window, operand 2, single buffered']
    #allocation8 [shape = 'u8[65536]{0}', space=vmem, size = 0x10000, scoped, tag = 'input window, operand 3, single buffered']
    #allocation9 [shape = 's32[1]{0}', space=sflag, size = 0x4, scoped, tag = 'scoped memory for tpu_custom_call.1']
    #allocation10 [shape = 'u8[8192]{0}', space=vmem, size = 0x2000, scoped, tag = 'output window, operand 0, single buffered']
    %9 = vsyncpa [#allocation3], 0
    %10 = vsyncpa [#allocation6], 0
    %11 = vsyncpa [#allocation9], 0
    %12 = vsyncpa [#allocation4], 0
    // Predicated region
    $region2: #{tpu_custom_call.1} parent=1 // pred_check
      _
    $region3: #{tpu_custom_call.1} parent=1 // pred_check_branch
      %14 = sbr.rel (0) target = $region5
    $region4: #{tpu_custom_call.1} parent=1 // pred_region
      %16 = vsyncadd [#allocation3], 0
      %s17 = sshll.u32 %s0, 4
      %s18 = int_to_ptr.hbm [resolvable:$true] %s17
      %s19 = sshll.u32 [#allocation2], 4
      %s20 = int_to_ptr.vmem [resolvable:$true] %s19
      %25 = dma.hbm_to_vmem [thread:$0]  %s18, 256, %s20, [#allocation3], 128, 128, 8
    $region5: #{tpu_custom_call.1} parent=1 // pred_fallthru
      _
    // Predicated region
    $region6: #{tpu_custom_call.1} parent=1 // pred_check
      _
    $region7: #{tpu_custom_call.1} parent=1 // pred_check_branch
      %27 = sbr.rel (0) target = $region9
    $region8: #{tpu_custom_call.1} parent=1 // pred_region
      %29 = vsyncadd [#allocation6], 0
      %s30 = sshll.u32 %s1, 4
      %s31 = int_to_ptr.hbm [resolvable:$true] %s30
      %s32 = sshll.u32 [#allocation5], 4
      %s33 = int_to_ptr.vmem [resolvable:$true] %s32
      %38 = dma.hbm_to_vmem [thread:$0]  %s31, 2048, %s33, [#allocation6], 128, 128, 8
    $region9: #{tpu_custom_call.1} parent=1 // pred_fallthru
      _
    // Predicated region
    $region10: #{tpu_custom_call.1} parent=1 // pred_check
      _
    $region11: #{tpu_custom_call.1} parent=1 // pred_check_branch
      %40 = sbr.rel (0) target = $region13
    $region12: #{tpu_custom_call.1} parent=1 // pred_region
      %42 = vsyncadd [#allocation6], 0
      %s43 = sshll.u32 %s2, 4
      %s44 = int_to_ptr.hbm [resolvable:$true] %s43
      %s45 = sshll.u32 [#allocation7], 4
      %s46 = int_to_ptr.vmem [resolvable:$true] %s45
      %51 = dma.hbm_to_vmem [thread:$0]  %s44, 2048, %s46, [#allocation6], 128, 128, 8
    $region13: #{tpu_custom_call.1} parent=1 // pred_fallthru
      _
    // Predicated region
    $region14: #{tpu_custom_call.1} parent=1 // pred_check
      _
    $region15: #{tpu_custom_call.1} parent=1 // pred_check_branch
      %53 = sbr.rel (0) target = $region17
    $region16: #{tpu_custom_call.1} parent=1 // pred_region
      %55 = vsyncadd [#allocation9], 0
      %s56 = sshll.u32 %s3, 4
      %s57 = int_to_ptr.hbm [resolvable:$true] %s56
      %s58 = sshll.u32 [#allocation8], 4
      %s59 = int_to_ptr.vmem [resolvable:$true] %s58
      %64 = dma.hbm_to_vmem [thread:$0]  %s57, 2048, %s59, [#allocation9], 128, 128, 8
    $region17: #{tpu_custom_call.1} parent=1 // pred_fallthru
      _
    // Predicated region
    $region18: #{tpu_custom_call.1} parent=1 // pred_check
      _
    $region19: #{tpu_custom_call.1} parent=1 // pred_check_branch
      %66 = sbr.rel (0) target = $region21
    $region20: #{tpu_custom_call.1} parent=1 // pred_region
      %68 = dma.done [#allocation3], 256
    $region21: #{tpu_custom_call.1} parent=1 // pred_fallthru
      _
    // Predicated region
    $region22: #{tpu_custom_call.1} parent=1 // pred_check
      _
    $region23: #{tpu_custom_call.1} parent=1 // pred_check_branch
      %70 = sbr.rel (0) target = $region25
    $region24: #{tpu_custom_call.1} parent=1 // pred_region
      %72 = dma.done [#allocation6], 2048
    $region25: #{tpu_custom_call.1} parent=1 // pred_fallthru
      _
    // Predicated region
    $region26: #{tpu_custom_call.1} parent=1 // pred_check
      _
    $region27: #{tpu_custom_call.1} parent=1 // pred_check_branch
      %74 = sbr.rel (0) target = $region29
    $region28: #{tpu_custom_call.1} parent=1 // pred_region
      %76 = dma.done [#allocation6], 2048
    $region29: #{tpu_custom_call.1} parent=1 // pred_fallthru
      _
    // Predicated region
    $region30: #{tpu_custom_call.1} parent=1 // pred_check
      _
    $region31: #{tpu_custom_call.1} parent=1 // pred_check_branch
      %78 = sbr.rel (0) target = $region33
    $region32: #{tpu_custom_call.1} parent=1 // pred_region
      %80 = dma.done [#allocation9], 2048
    $region33: #{tpu_custom_call.1} parent=1 // pred_fallthru
      _
    %v81 = vld [vmem:[#allocation2] sm:$0xff]
    %v82 = vld [vmem:[#allocation2 + $0x8] sm:$0xff]
    %v83 = vld [vmem:[#allocation5] sm:$0xff]
    %v84 = vld [vmem:[#allocation5 + $0x8] sm:$0xff]
    %v85 = vld [vmem:[#allocation5 + $0x10] sm:$0xff]
    %v86 = vld [vmem:[#allocation5 + $0x18] sm:$0xff]
    %v87 = vld [vmem:[#allocation5 + $0x20] sm:$0xff]
    %v88 = vld [vmem:[#allocation5 + $0x28] sm:$0xff]
    %v89 = vld [vmem:[#allocation5 + $0x30] sm:$0xff]
    %v90 = vld [vmem:[#allocation5 + $0x38] sm:$0xff]
    %v91 = vld [vmem:[#allocation5 + $0x40] sm:$0xff]
    %v92 = vld [vmem:[#allocation5 + $0x48] sm:$0xff]
    %v93 = vld [vmem:[#allocation5 + $0x50] sm:$0xff]
    %v94 = vld [vmem:[#allocation5 + $0x58] sm:$0xff]
    %v95 = vld [vmem:[#allocation5 + $0x60] sm:$0xff]
    %v96 = vld [vmem:[#allocation5 + $0x68] sm:$0xff]
    %v97 = vld [vmem:[#allocation5 + $0x70] sm:$0xff]
    %v98 = vld [vmem:[#allocation5 + $0x78] sm:$0xff]
    %99 = vmatpush.msra.mxu0 %v98
    %100 = vmatpush.msra.mxu0 %v97
    %101 = vmatpush.msra.mxu0 %v96
    %102 = vmatpush.msra.mxu0 %v95
    %103 = vmatpush.msra.mxu0 %v94
    %104 = vmatpush.msra.mxu0 %v93
    %105 = vmatpush.msra.mxu0 %v92
    %106 = vmatpush.msra.mxu0 %v91
    %107 = vmatpush.msra.mxu0 %v90
    %108 = vmatpush.msra.mxu0 %v89
    %109 = vmatpush.msra.mxu0 %v88
    %110 = vmatpush.msra.mxu0 %v87
    %111 = vmatpush.msra.mxu0 %v86
    %112 = vmatpush.msra.mxu0 %v85
    %113 = vmatpush.msra.mxu0 %v84
    %114 = vmatpush.msra.mxu0 %v83
    %115 = vmatmul.f32.gmra.mxu0 %v81
    %v116 = vpop.f32.mrf.mxu0
    %v117 = vadd.f32 0.0, %v116
    %118 = vmatmul.f32.gmra.mxu0 %v82
    %v119 = vpop.f32.mrf.mxu0
    %v120 = vadd.f32 0.0, %v119
    %121 = vdwg.mxu0
    %v122 = vmax.f32 %v117, 0.0
    %v123 = vmax.f32 %v120, 0.0
    %v124 = vld [vmem:[#allocation7] sm:$0xff]
    %v125 = vld [vmem:[#allocation7 + $0x8] sm:$0xff]
    %v126 = vld [vmem:[#allocation7 + $0x10] sm:$0xff]
    %v127 = vld [vmem:[#allocation7 + $0x18] sm:$0xff]
    %v128 = vld [vmem:[#allocation7 + $0x20] sm:$0xff]
    %v129 = vld [vmem:[#allocation7 + $0x28] sm:$0xff]
    %v130 = vld [vmem:[#allocation7 + $0x30] sm:$0xff]
    %v131 = vld [vmem:[#allocation7 + $0x38] sm:$0xff]
    %v132 = vld [vmem:[#allocation7 + $0x40] sm:$0xff]
    %v133 = vld [vmem:[#allocation7 + $0x48] sm:$0xff]
    %v134 = vld [vmem:[#allocation7 + $0x50] sm:$0xff]
    %v135 = vld [vmem:[#allocation7 + $0x58] sm:$0xff]
    %v136 = vld [vmem:[#allocation7 + $0x60] sm:$0xff]
    %v137 = vld [vmem:[#allocation7 + $0x68] sm:$0xff]
    %v138 = vld [vmem:[#allocation7 + $0x70] sm:$0xff]
    %v139 = vld [vmem:[#allocation7 + $0x78] sm:$0xff]
    %140 = vmatpush.msra.mxu0 %v139
    %141 = vmatpush.msra.mxu0 %v138
    %142 = vmatpush.msra.mxu0 %v137
    %143 = vmatpush.msra.mxu0 %v136
    %144 = vmatpush.msra.mxu0 %v135
    %145 = vmatpush.msra.mxu0 %v134
    %146 = vmatpush.msra.mxu0 %v133
    %147 = vmatpush.msra.mxu0 %v132
    %148 = vmatpush.msra.mxu0 %v131
    %149 = vmatpush.msra.mxu0 %v130
    %150 = vmatpush.msra.mxu0 %v129
    %151 = vmatpush.msra.mxu0 %v128
    %152 = vmatpush.msra.mxu0 %v127
    %153 = vmatpush.msra.mxu0 %v126
    %154 = vmatpush.msra.mxu0 %v125
    %155 = vmatpush.msra.mxu0 %v124
    %156 = vmatmul.f32.gmra.mxu0 %v122
    %v157 = vpop.f32.mrf.mxu0
    %v158 = vadd.f32 %v117, %v157
    %159 = vmatmul.f32.gmra.mxu0 %v123
    %v160 = vpop.f32.mrf.mxu0
    %v161 = vadd.f32 %v120, %v160
    %162 = vdwg.mxu0
    %v163 = vmax.f32 %v158, 0.0
    %v164 = vmax.f32 %v161, 0.0
    %v165 = vld [vmem:[#allocation8] sm:$0xff]
    %v166 = vld [vmem:[#allocation8 + $0x8] sm:$0xff]
    %v167 = vld [vmem:[#allocation8 + $0x10] sm:$0xff]
    %v168 = vld [vmem:[#allocation8 + $0x18] sm:$0xff]
    %v169 = vld [vmem:[#allocation8 + $0x20] sm:$0xff]
    %v170 = vld [vmem:[#allocation8 + $0x28] sm:$0xff]
    %v171 = vld [vmem:[#allocation8 + $0x30] sm:$0xff]
    %v172 = vld [vmem:[#allocation8 + $0x38] sm:$0xff]
    %v173 = vld [vmem:[#allocation8 + $0x40] sm:$0xff]
    %v174 = vld [vmem:[#allocation8 + $0x48] sm:$0xff]
    %v175 = vld [vmem:[#allocation8 + $0x50] sm:$0xff]
    %v176 = vld [vmem:[#allocation8 + $0x58] sm:$0xff]
    %v177 = vld [vmem:[#allocation8 + $0x60] sm:$0xff]
    %v178 = vld [vmem:[#allocation8 + $0x68] sm:$0xff]
    %v179 = vld [vmem:[#allocation8 + $0x70] sm:$0xff]
    %v180 = vld [vmem:[#allocation8 + $0x78] sm:$0xff]
    %181 = vmatpush.msra.mxu0 %v180
    %182 = vmatpush.msra.mxu0 %v179
    %183 = vmatpush.msra.mxu0 %v178
    %184 = vmatpush.msra.mxu0 %v177
    %185 = vmatpush.msra.mxu0 %v176
    %186 = vmatpush.msra.mxu0 %v175
    %187 = vmatpush.msra.mxu0 %v174
    %188 = vmatpush.msra.mxu0 %v173
    %189 = vmatpush.msra.mxu0 %v172
    %190 = vmatpush.msra.mxu0 %v171
    %191 = vmatpush.msra.mxu0 %v170
    %192 = vmatpush.msra.mxu0 %v169
    %193 = vmatpush.msra.mxu0 %v168
    %194 = vmatpush.msra.mxu0 %v167
    %195 = vmatpush.msra.mxu0 %v166
    %196 = vmatpush.msra.mxu0 %v165
    %197 = vmatmul.f32.gmra.mxu0 %v163
    %v198 = vpop.f32.mrf.mxu0
    %v199 = vadd.f32 0.0, %v198
    %200 = vmatmul.f32.gmra.mxu0 %v164
    %v201 = vpop.f32.mrf.mxu0
    %v202 = vadd.f32 0.0, %v201
    %203 = vdwg.mxu0
    %204 = vst [vmem:[#allocation10] sm:$0xff] %v199
    %205 = vst [vmem:[#allocation10 + $0x8] sm:$0xff] %v202
    // Predicated region
    $region34: #{tpu_custom_call.1} parent=1 // pred_check
      _
    $region35: #{tpu_custom_call.1} parent=1 // pred_check_branch
      %207 = sbr.rel (0) target = $region37
    $region36: #{tpu_custom_call.1} parent=1 // pred_region
      %209 = vsyncadd [#allocation4], 0
      %s210 = sshll.u32 [#allocation10], 4
      %s211 = int_to_ptr.vmem [resolvable:$true] %s210
      %s212 = sshll.u32 %s4, 4
      %s213 = int_to_ptr.hbm [resolvable:$true] %s212
      %218 = dma.vmem_to_hbm [thread:$0]  %s211, 256, %s213, [#allocation4], 128, 128, 8
    $region37: #{tpu_custom_call.1} parent=1 // pred_fallthru
      _
    // Predicated region
    $region38: #{tpu_custom_call.1} parent=1 // pred_check
      _
    $region39: #{tpu_custom_call.1} parent=1 // pred_check_branch
      %220 = sbr.rel (0) target = $region41
    $region40: #{tpu_custom_call.1} parent=1 // pred_region
      %222 = dma.done [#allocation4], 256
    $region41: #{tpu_custom_call.1} parent=1 // pred_fallthru
      _
    %223 = vsyncpa [#allocation3], 1
    %224 = vsyncpa [#allocation6], 1
    %225 = vsyncpa [#allocation9], 1
    %226 = vsyncpa [#allocation4], 1

</llo_original>
